<compile_context>
chip_gen: v5e
topology: v5e:2x2
jax: 0.10.0
libtpu: 0.0.40
codegen_flags: <defaults>
</compile_context>

<pallas_src>
import jax
import jax.numpy as jnp
from jax.experimental import pallas as pl
from jax.experimental.pallas import tpu as pltpu


def _round_up(x, m):
    return ((x + m - 1) // m) * m


def bandwidth_actor_kernel(state_ref,       # (TB, S)
                           w1_ref, b1_ref,  # (S, H), (1, H)
                           w2_ref, b2_ref,  # (H, H), (1, H)
                           w3_ref, b3_ref,  # (H, A), (1, A)  -- col 0 pre-scaled by 2
                           cs_ref, cb_ref,  # (1, A) per-column scale / bias
                           out_ref):        # (TB, A)
    x = state_ref[...]

    h1 = jnp.dot(x, w1_ref[...], preferred_element_type=jnp.float32) + b1_ref[...]
    h1 = jnp.maximum(h1, 0.0)

    h2 = jnp.dot(h1, w2_ref[...], preferred_element_type=jnp.float32) + b2_ref[...]
    h2 = jnp.maximum(h2, 0.0)

    logits = jnp.dot(h2, w3_ref[...], preferred_element_type=jnp.float32) + b3_ref[...]

    # (tanh(z)+1)/2 == sigmoid(2z); fc3 column 0 was pre-scaled by 2 in the
    # wrapper, so one EUP sigmoid pass + one per-column FMA reproduces
    #   col 0 : sigmoid(2*z0) * (high-low) + low
    #   col i : sigmoid(z_i)
    out_ref[...] = jax.nn.sigmoid(logits) * cs_ref[...] + cb_ref[...]


def bandwidth_actor_forward(state, params, high, low, *, block_b=4096):
    """state: [B, state_dim] float32; high/low: scalars. Returns [B, action_dim]."""
    w1, b1, w2, b2, w3, b3 = params
    B, S = state.shape
    H = w1.shape[1]
    A = w3.shape[1]

    # Fold the tanh->sigmoid rescale of column 0 into fc3 (exact: *2 is a power of 2).
    w3s = jnp.concatenate([w3[:, :1] * 2.0, w3[:, 1:]], axis=1)
    b3s = jnp.concatenate([b3[:, :1] * 2.0, b3[:, 1:]], axis=1)

    hi_minus_lo = (jnp.float32(high) - jnp.float32(low)).reshape(1, 1)
    low_arr = jnp.float32(low).reshape(1, 1)
    colscale = jnp.concatenate([hi_minus_lo, jnp.ones((1, A - 1), jnp.float32)], axis=1)
    colbias = jnp.concatenate([low_arr, jnp.zeros((1, A - 1), jnp.float32)], axis=1)

    # Batch tile: multiple of 8 (sublane rule), big enough to amortize per-step
    # overhead, but capped at ~B/2 so large batches yield >=2 grid steps (v7x:
    # feeds both TensorCores via the "parallel" axis).
    tb_cap = max(8, _round_up(block_b, 8))
    tb_half = _round_up(max(1, (B + 1) // 2), 8)
    TB = min(tb_cap, tb_half)
    grid = (pl.cdiv(B, TB),)   # ragged last block handled by Pallas masking

    flops = 2 * B * (S * H + H * H + H * A)
    bytes_accessed = 4 * (B * S + S * H + H + H * H + H + H * A + A + 2 * A + B * A)
    cost = pl.CostEstimate(flops=flops, transcendentals=B * A,
                           bytes_accessed=bytes_accessed)

    out = pl.pallas_call(
        bandwidth_actor_kernel,
        out_shape=jax.ShapeDtypeStruct((B, A), jnp.float32),
        grid=grid,
        in_specs=[
            pl.BlockSpec((TB, S), lambda i: (i, 0)),   # state: streamed over batch
            pl.BlockSpec((S, H), lambda i: (0, 0)),    # w1 (VMEM-resident)
            pl.BlockSpec((1, H), lambda i: (0, 0)),    # b1
            pl.BlockSpec((H, H), lambda i: (0, 0)),    # w2
            pl.BlockSpec((1, H), lambda i: (0, 0)),    # b2
            pl.BlockSpec((H, A), lambda i: (0, 0)),    # w3 (col 0 pre-scaled)
            pl.BlockSpec((1, A), lambda i: (0, 0)),    # b3 (col 0 pre-scaled)
            pl.BlockSpec((1, A), lambda i: (0, 0)),    # colscale = [high-low, 1, ...]
            pl.BlockSpec((1, A), lambda i: (0, 0)),    # colbias  = [low, 0, ...]
        ],
        out_specs=pl.BlockSpec((TB, A), lambda i: (i, 0)),
        compiler_params=pltpu.CompilerParams(
            dimension_semantics=("parallel",)),
        cost_estimate=cost,
    )(state, w1, b1, w2, b2, w3s, b3s, colscale, colbias)

    return out


def init_params(key, state_dim, hidden_dim, action_dim):
    """Deterministic init mimicking nn.Linear's U(-1/sqrt(fan_in), 1/sqrt(fan_in)).
    Weights are stored pre-transposed as [in, out]."""
    ks = jax.random.split(key, 6)

    def lin(kw, kb, fan_in, fan_out):
        bound = 1.0 / jnp.sqrt(jnp.float32(fan_in))
        w = jax.random.uniform(kw, (fan_in, fan_out), jnp.float32, -bound, bound)
        b = jax.random.uniform(kb, (1, fan_out), jnp.float32, -bound, bound)
        return w, b

    w1, b1 = lin(ks[0], ks[1], state_dim, hidden_dim)
    w2, b2 = lin(ks[2], ks[3], hidden_dim, hidden_dim)
    w3, b3 = lin(ks[4], ks[5], hidden_dim, action_dim)
    return (w1, b1, w2, b2, w3, b3)


def reference_forward(state, params, high, low):
    """Pure-JAX reference matching the PyTorch module semantics (tanh form)."""
    w1, b1, w2, b2, w3, b3 = params
    x = jnp.maximum(state @ w1 + b1, 0.0)
    x = jnp.maximum(x @ w2 + b2, 0.0)
    x = x @ w3 + b3
    out_mod = jnp.tanh(x[:, 0:1]) + 1.0
    bw = out_mod / 2.0 * (high - low) + low
    rest = jax.nn.sigmoid(x[:, 1:])
    return jnp.concatenate([bw, rest], axis=1)


if __name__ == "__main__":
    # Small shapes consistent with the module: state=[B, state_dim]
    B, state_dim, hidden_dim, action_dim = 8, 16, 32, 4
    high, low = 5.0, 1.0

    key = jax.random.PRNGKey(0)
    k_state, k_params = jax.random.split(key)

    state = jax.random.normal(k_state, (B, state_dim), dtype=jnp.float32)
    params = init_params(k_params, state_dim, hidden_dim, action_dim)

    out = jax.block_until_ready(bandwidth_actor_forward(state, params, high, low))
    ref = jax.block_until_ready(reference_forward(state, params, high, low))
    assert out.shape == (B, action_dim)
    assert jnp.allclose(out, ref, atol=1e-5, rtol=1e-5), (out, ref)

    # Ragged multi-tile batch: exercises grid>1 and the masked last block
    # (no concat-pad on the input, no output slab slice).
    B2 = 600
    state2 = jax.random.normal(jax.random.PRNGKey(1), (B2, state_dim), jnp.float32)
    out2 = jax.block_until_ready(
        bandwidth_actor_forward(state2, params, high, low, block_b=256))
    ref2 = jax.block_until_ready(reference_forward(state2, params, high, low))
    assert out2.shape == (B2, action_dim)
    assert jnp.allclose(out2, ref2, atol=1e-5, rtol=1e-5)

    print("KERNEL_OK")
</pallas_src>

<mosaic_0001>
module attributes {stable_mosaic.version = 11 : i64} {
  func.func @bandwidth_actor_kernel(%arg0: i32, %arg1: memref<8x16xf32, #tpu.memory_space<vmem>>, %arg2: memref<16x32xf32, #tpu.memory_space<vmem>>, %arg3: memref<1x32xf32, #tpu.memory_space<vmem>>, %arg4: memref<32x32xf32, #tpu.memory_space<vmem>>, %arg5: memref<1x32xf32, #tpu.memory_space<vmem>>, %arg6: memref<32x4xf32, #tpu.memory_space<vmem>>, %arg7: memref<1x4xf32, #tpu.memory_space<vmem>>, %arg8: memref<1x4xf32, #tpu.memory_space<vmem>>, %arg9: memref<1x4xf32, #tpu.memory_space<vmem>>, %arg10: memref<8x4xf32, #tpu.memory_space<vmem>>) attributes {dimension_semantics = [#tpu.dimension_semantics<parallel>], iteration_bounds = array<i64: 1>, scalar_prefetch = 0 : i64, scratch_operands = 0 : i64, tpu.core_type = #tpu.core_type<tc>, window_params = [{transform_indices = @transform_0, window_bounds = array<i64: 8, 16>}, {pipeline_mode = #tpu.pipeline_mode<synchronous>, transform_indices = @transform_1, window_bounds = array<i64: 16, 32>}, {pipeline_mode = #tpu.pipeline_mode<synchronous>, transform_indices = @transform_2, window_bounds = array<i64: 1, 32>}, {pipeline_mode = #tpu.pipeline_mode<synchronous>, transform_indices = @transform_3, window_bounds = array<i64: 32, 32>}, {pipeline_mode = #tpu.pipeline_mode<synchronous>, transform_indices = @transform_4, window_bounds = array<i64: 1, 32>}, {pipeline_mode = #tpu.pipeline_mode<synchronous>, transform_indices = @transform_5, window_bounds = array<i64: 32, 4>}, {pipeline_mode = #tpu.pipeline_mode<synchronous>, transform_indices = @transform_6, window_bounds = array<i64: 1, 4>}, {pipeline_mode = #tpu.pipeline_mode<synchronous>, transform_indices = @transform_7, window_bounds = array<i64: 1, 4>}, {pipeline_mode = #tpu.pipeline_mode<synchronous>, transform_indices = @transform_8, window_bounds = array<i64: 1, 4>}, {transform_indices = @transform_9, window_bounds = array<i64: 8, 4>}]} {
    %c0 = arith.constant 0 : index
    %c0_0 = arith.constant 0 : index
    %0 = vector.load %arg1[%c0, %c0_0] : memref<8x16xf32, #tpu.memory_space<vmem>>, vector<8x16xf32>
    %c0_1 = arith.constant 0 : index
    %c0_2 = arith.constant 0 : index
    %1 = vector.load %arg2[%c0_1, %c0_2] : memref<16x32xf32, #tpu.memory_space<vmem>>, vector<16x32xf32>
    %cst = arith.constant dense<0.000000e+00> : vector<8x32xf32>
    %2 = tpu.matmul %0, %1, %cst {dimension_numbers = #tpu.dot_dimension_numbers<[1], [0], [0], [1], [0, 0, 1, 1], [], []>} : vector<8x16xf32>, vector<16x32xf32>, vector<8x32xf32> -> vector<8x32xf32>
    %c0_3 = arith.constant 0 : index
    %c0_4 = arith.constant 0 : index
    %3 = vector.load %arg3[%c0_3, %c0_4] : memref<1x32xf32, #tpu.memory_space<vmem>>, vector<1x32xf32>
    %4 = vector.broadcast %3 : vector<1x32xf32> to vector<8x32xf32>
    %5 = arith.addf %2, %4 : vector<8x32xf32>
    %cst_5 = arith.constant 0.000000e+00 : f32
    %6 = vector.broadcast %cst_5 : f32 to vector<8x32xf32>
    %7 = arith.maximumf %5, %6 : vector<8x32xf32>
    %c0_6 = arith.constant 0 : index
    %c0_7 = arith.constant 0 : index
    %8 = vector.load %arg4[%c0_6, %c0_7] : memref<32x32xf32, #tpu.memory_space<vmem>>, vector<32x32xf32>
    %cst_8 = arith.constant dense<0.000000e+00> : vector<8x32xf32>
    %9 = tpu.matmul %7, %8, %cst_8 {dimension_numbers = #tpu.dot_dimension_numbers<[1], [0], [0], [1], [0, 0, 1, 1], [], []>} : vector<8x32xf32>, vector<32x32xf32>, vector<8x32xf32> -> vector<8x32xf32>
    %c0_9 = arith.constant 0 : index
    %c0_10 = arith.constant 0 : index
    %10 = vector.load %arg5[%c0_9, %c0_10] : memref<1x32xf32, #tpu.memory_space<vmem>>, vector<1x32xf32>
    %11 = vector.broadcast %10 : vector<1x32xf32> to vector<8x32xf32>
    %12 = arith.addf %9, %11 : vector<8x32xf32>
    %cst_11 = arith.constant 0.000000e+00 : f32
    %13 = vector.broadcast %cst_11 : f32 to vector<8x32xf32>
    %14 = arith.maximumf %12, %13 : vector<8x32xf32>
    %c0_12 = arith.constant 0 : index
    %c0_13 = arith.constant 0 : index
    %15 = vector.load %arg6[%c0_12, %c0_13] : memref<32x4xf32, #tpu.memory_space<vmem>>, vector<32x4xf32>
    %cst_14 = arith.constant dense<0.000000e+00> : vector<8x4xf32>
    %16 = tpu.matmul %14, %15, %cst_14 {dimension_numbers = #tpu.dot_dimension_numbers<[1], [0], [0], [1], [0, 0, 1, 1], [], []>} : vector<8x32xf32>, vector<32x4xf32>, vector<8x4xf32> -> vector<8x4xf32>
    %c0_15 = arith.constant 0 : index
    %c0_16 = arith.constant 0 : index
    %17 = vector.load %arg7[%c0_15, %c0_16] : memref<1x4xf32, #tpu.memory_space<vmem>>, vector<1x4xf32>
    %18 = vector.broadcast %17 : vector<1x4xf32> to vector<8x4xf32>
    %19 = arith.addf %16, %18 : vector<8x4xf32>
    %20 = arith.negf %19 : vector<8x4xf32>
    %21 = math.exp %20 : vector<8x4xf32>
    %cst_17 = arith.constant 1.000000e+00 : f32
    %22 = vector.broadcast %cst_17 : f32 to vector<8x4xf32>
    %23 = arith.addf %22, %21 : vector<8x4xf32>
    %24 = arith.divf %22, %23 : vector<8x4xf32>
    %c0_18 = arith.constant 0 : index
    %c0_19 = arith.constant 0 : index
    %25 = vector.load %arg8[%c0_18, %c0_19] : memref<1x4xf32, #tpu.memory_space<vmem>>, vector<1x4xf32>
    %26 = vector.broadcast %25 : vector<1x4xf32> to vector<8x4xf32>
    %27 = arith.mulf %24, %26 : vector<8x4xf32>
    %c0_20 = arith.constant 0 : index
    %c0_21 = arith.constant 0 : index
    %28 = vector.load %arg9[%c0_20, %c0_21] : memref<1x4xf32, #tpu.memory_space<vmem>>, vector<1x4xf32>
    %29 = vector.broadcast %28 : vector<1x4xf32> to vector<8x4xf32>
    %30 = arith.addf %27, %29 : vector<8x4xf32>
    %c0_22 = arith.constant 0 : index
    %c0_23 = arith.constant 0 : index
    %31 = vector.load %arg10[%c0_22, %c0_23] : memref<8x4xf32, #tpu.memory_space<vmem>>, vector<8x4xf32>
    tpu.vector_store %arg10[%c0_22, %c0_23], %30 {strides = array<i32>} : memref<8x4xf32, #tpu.memory_space<vmem>>, vector<8x4xf32>,
    return
  }
  func.func @transform_0(%arg0: i32) -> (i32, i32) {
    %c0_i32 = arith.constant 0 : i32
    %c0_i32_0 = arith.constant 0 : i32
    return %arg0, %c0_i32 : i32, i32
  }
  func.func @transform_1(%arg0: i32) -> (i32, i32) {
    %c0_i32 = arith.constant 0 : i32
    %c0_i32_0 = arith.constant 0 : i32
    %c0_i32_1 = arith.constant 0 : i32
    return %c0_i32, %c0_i32_0 : i32, i32
  }
  func.func @transform_2(%arg0: i32) -> (i32, i32) {
    %c0_i32 = arith.constant 0 : i32
    %c0_i32_0 = arith.constant 0 : i32
    %c0_i32_1 = arith.constant 0 : i32
    return %c0_i32, %c0_i32_0 : i32, i32
  }
  func.func @transform_3(%arg0: i32) -> (i32, i32) {
    %c0_i32 = arith.constant 0 : i32
    %c0_i32_0 = arith.constant 0 : i32
    %c0_i32_1 = arith.constant 0 : i32
    return %c0_i32, %c0_i32_0 : i32, i32
  }
  func.func @transform_4(%arg0: i32) -> (i32, i32) {
    %c0_i32 = arith.constant 0 : i32
    %c0_i32_0 = arith.constant 0 : i32
    %c0_i32_1 = arith.constant 0 : i32
    return %c0_i32, %c0_i32_0 : i32, i32
  }
  func.func @transform_5(%arg0: i32) -> (i32, i32) {
    %c0_i32 = arith.constant 0 : i32
    %c0_i32_0 = arith.constant 0 : i32
    %c0_i32_1 = arith.constant 0 : i32
    return %c0_i32, %c0_i32_0 : i32, i32
  }
  func.func @transform_6(%arg0: i32) -> (i32, i32) {
    %c0_i32 = arith.constant 0 : i32
    %c0_i32_0 = arith.constant 0 : i32
    %c0_i32_1 = arith.constant 0 : i32
    return %c0_i32, %c0_i32_0 : i32, i32
  }
  func.func @transform_7(%arg0: i32) -> (i32, i32) {
    %c0_i32 = arith.constant 0 : i32
    %c0_i32_0 = arith.constant 0 : i32
    %c0_i32_1 = arith.constant 0 : i32
    return %c0_i32, %c0_i32_0 : i32, i32
  }
  func.func @transform_8(%arg0: i32) -> (i32, i32) {
    %c0_i32 = arith.constant 0 : i32
    %c0_i32_0 = arith.constant 0 : i32
    %c0_i32_1 = arith.constant 0 : i32
    return %c0_i32, %c0_i32_0 : i32, i32
  }
  func.func @transform_9(%arg0: i32) -> (i32, i32) {
    %c0_i32 = arith.constant 0 : i32
    %c0_i32_0 = arith.constant 0 : i32
    return %arg0, %c0_i32 : i32, i32
  }
}

</mosaic_0001>

<llo_original>
// kernel: tpu_custom_call.1
$region0: #{tpu_custom_call.1}
  #allocation0 [shape = 'u32[]', space=smem, size = 0x4, offset = 0x4, fixed_abs, tag = 'smem constant byte address 0x4 - core index']
  #allocation1 [shape = 'u32[72,128]{1,0:T(1,128)}', space=vmem, size = 0x9000, scoped, tag = 'internal scratch']
  %s0 = inlined_call_operand.hbm [shape: f32[8,16], index: 0, kind: input, shape index: {}]
  %s1 = inlined_call_operand.hbm [shape: f32[16,32], index: 1, kind: input, shape index: {}]
  %s2 = inlined_call_operand.vmem [shape: f32[1,32], index: 2, kind: input, shape index: {}]
  %s3 = inlined_call_operand.vmem [shape: f32[32,32], index: 3, kind: input, shape index: {}]
  %s4 = inlined_call_operand.vmem [shape: f32[1,32], index: 4, kind: input, shape index: {}]
  %s5 = inlined_call_operand.vmem [shape: f32[32,4], index: 5, kind: input, shape index: {}]
  %s6 = inlined_call_operand.vmem [shape: f32[1,4], index: 6, kind: input, shape index: {}]
  %s7 = inlined_call_operand.vmem [shape: f32[1,4], index: 7, kind: input, shape index: {}]
  %s8 = inlined_call_operand.vmem [shape: f32[1,4], index: 8, kind: input, shape index: {}]
  %s9 = inlined_call_operand.vmem [shape: f32[8,4], index: 9, kind: output, shape index: {}]
  %s10 = sld [smem:[#allocation0]]
  $region54: #{tpu_custom_call.1} parent=0
    _
  %s12 = ssub.s32 1, %s10
  %s13 = scalar_select 0, %s12, %s10
  $region1: #{tpu_custom_call.1} parent=0
    #allocation2 [shape = 'u8[4096]{0}', space=vmem, size = 0x1000, scoped, tag = 'input window, operand 0, single buffered']
    #allocation3 [shape = 's32[1]{0}', space=sflag, size = 0x4, scoped, tag = 'scoped memory for tpu_custom_call.1']
    #allocation4 [shape = 'u8[8192]{0}', space=vmem, size = 0x2000, scoped, tag = 'input window, operand 1, single buffered']
    #allocation5 [shape = 's32[1]{0}', space=sflag, size = 0x4, scoped, tag = 'scoped memory for tpu_custom_call.1']
    %14 = vsyncpa [#allocation3], 0
    %15 = vsyncpa [#allocation5], 0
    // Predicated region
    $region2: #{tpu_custom_call.1} parent=1 // pred_check
      _
    $region3: #{tpu_custom_call.1} parent=1 // pred_check_branch
      %17 = sbr.rel (0) target = $region5
    $region4: #{tpu_custom_call.1} parent=1 // pred_region
      %19 = vsyncadd [#allocation3], 0
      %s21 = sshll.u32 %s0, 4
      %s22 = int_to_ptr.hbm [resolvable:$true] %s21
      %s23 = sshll.u32 [#allocation2], 4
      %s24 = int_to_ptr.vmem [resolvable:$true] %s23
      %26 = dma.hbm_to_vmem [thread:$0]  %s22, 128, %s24, [#allocation3]
    $region5: #{tpu_custom_call.1} parent=1 // pred_fallthru
      _
    // Predicated region
    $region6: #{tpu_custom_call.1} parent=1 // pred_check
      _
    $region7: #{tpu_custom_call.1} parent=1 // pred_check_branch
      %28 = sbr.rel (0) target = $region9
    $region8: #{tpu_custom_call.1} parent=1 // pred_region
      %30 = vsyncadd [#allocation5], 0
      %s31 = sshll.u32 %s1, 4
      %s32 = int_to_ptr.hbm [resolvable:$true] %s31
      %s33 = sshll.u32 [#allocation4], 4
      %s34 = int_to_ptr.vmem [resolvable:$true] %s33
      %39 = dma.hbm_to_vmem [thread:$0]  %s32, 256, %s34, [#allocation5], 128, 128, 8
    $region9: #{tpu_custom_call.1} parent=1 // pred_fallthru
      _
    // Predicated region
    $region10: #{tpu_custom_call.1} parent=1 // pred_check
      _
    $region11: #{tpu_custom_call.1} parent=1 // pred_check_branch
      %41 = sbr.rel (0) target = $region13
    $region12: #{tpu_custom_call.1} parent=1 // pred_region
      _
    $region13: #{tpu_custom_call.1} parent=1 // pred_fallthru
      _
    // Predicated region
    $region14: #{tpu_custom_call.1} parent=1 // pred_check
      _
    $region15: #{tpu_custom_call.1} parent=1 // pred_check_branch
      %43 = sbr.rel (0) target = $region17
    $region16: #{tpu_custom_call.1} parent=1 // pred_region
      _
    $region17: #{tpu_custom_call.1} parent=1 // pred_fallthru
      _
    // Predicated region
    $region18: #{tpu_custom_call.1} parent=1 // pred_check
      _
    $region19: #{tpu_custom_call.1} parent=1 // pred_check_branch
      %45 = sbr.rel (0) target = $region21
    $region20: #{tpu_custom_call.1} parent=1 // pred_region
      _
    $region21: #{tpu_custom_call.1} parent=1 // pred_fallthru
      _
    // Predicated region
    $region22: #{tpu_custom_call.1} parent=1 // pred_check
      _
    $region23: #{tpu_custom_call.1} parent=1 // pred_check_branch
      %47 = sbr.rel (0) target = $region25
    $region24: #{tpu_custom_call.1} parent=1 // pred_region
      _
    $region25: #{tpu_custom_call.1} parent=1 // pred_fallthru
      _
    // Predicated region
    $region26: #{tpu_custom_call.1} parent=1 // pred_check
      _
    $region27: #{tpu_custom_call.1} parent=1 // pred_check_branch
      %49 = sbr.rel (0) target = $region29
    $region28: #{tpu_custom_call.1} parent=1 // pred_region
      _
    $region29: #{tpu_custom_call.1} parent=1 // pred_fallthru
      _
    // Predicated region
    $region30: #{tpu_custom_call.1} parent=1 // pred_check
      _
    $region31: #{tpu_custom_call.1} parent=1 // pred_check_branch
      %51 = sbr.rel (0) target = $region33
    $region32: #{tpu_custom_call.1} parent=1 // pred_region
      _
    $region33: #{tpu_custom_call.1} parent=1 // pred_fallthru
      _
    // Predicated region
    $region34: #{tpu_custom_call.1} parent=1 // pred_check
      _
    $region35: #{tpu_custom_call.1} parent=1 // pred_check_branch
      %53 = sbr.rel (0) target = $region37
    $region36: #{tpu_custom_call.1} parent=1 // pred_region
      _
    $region37: #{tpu_custom_call.1} parent=1 // pred_fallthru
      _
    // Predicated region
    $region38: #{tpu_custom_call.1} parent=1 // pred_check
      _
    $region39: #{tpu_custom_call.1} parent=1 // pred_check_branch
      %55 = sbr.rel (0) target = $region41
    $region40: #{tpu_custom_call.1} parent=1 // pred_region
      %57 = dma.done [#allocation3], 128
    $region41: #{tpu_custom_call.1} parent=1 // pred_fallthru
      _
    // Predicated region
    $region42: #{tpu_custom_call.1} parent=1 // pred_check
      _
    $region43: #{tpu_custom_call.1} parent=1 // pred_check_branch
      %59 = sbr.rel (0) target = $region45
    $region44: #{tpu_custom_call.1} parent=1 // pred_region
      %61 = dma.done [#allocation5], 256
    $region45: #{tpu_custom_call.1} parent=1 // pred_fallthru
      _
    %v62 = vld [vmem:[#allocation2] sm:$0xff]
    %v63 = vld [vmem:[#allocation4] sm:$0xff]
    %v64 = vld [vmem:[#allocation4 + $0x8] sm:$0xff]
    %v65 = vld [vmem:[%s2] sm:$0x1]
    %v67 = vperm.slane %v65, 0
    %vm69 = vcmask 130048
    %v71 = vsel %vm69, %v62, 0
    %73 = vmatpush.msra.mxu0 0.0
    %74 = vmatpush.msra.mxu0 0.0
    %75 = vmatpush.msra.mxu0 0.0
    %76 = vmatpush.msra.mxu0 0.0
    %77 = vmatpush.msra.mxu0 0.0
    %78 = vmatpush.msra.mxu0 0.0
    %79 = vmatpush.msra.mxu0 0.0
    %80 = vmatpush.msra.mxu0 0.0
    %81 = vmatpush.msra.mxu0 0.0
    %82 = vmatpush.msra.mxu0 0.0
    %83 = vmatpush.msra.mxu0 0.0
    %84 = vmatpush.msra.mxu0 0.0
    %85 = vmatpush.msra.mxu0 0.0
    %86 = vmatpush.msra.mxu0 0.0
    %87 = vmatpush.msra.mxu0 %v64
    %88 = vmatpush.msra.mxu0 %v63
    %89 = vmatmul.f32.gmra.mxu0 %v71
    %v90 = vpop.f32.mrf.mxu0
    %v91 = vadd.f32 %v67, %v90
    %92 = vdwg.mxu0
    %v93 = vmax.f32 %v91, 0.0
    %v94 = vld [vmem:[%s3] sm:$0xff]
    %v95 = vld [vmem:[%s3 + $0x8] sm:$0xff]
    %v96 = vld [vmem:[%s3 + $0x10] sm:$0xff]
    %v97 = vld [vmem:[%s3 + $0x18] sm:$0xff]
    %v98 = vld [vmem:[%s4] sm:$0x1]
    %v100 = vperm.slane %v98, 0
    %vm102 = vcmask 261120
    %v104 = vsel %vm102, %v93, 0
    %106 = vmatpush.msra.mxu0 0.0
    %107 = vmatpush.msra.mxu0 0.0
    %108 = vmatpush.msra.mxu0 0.0
    %109 = vmatpush.msra.mxu0 0.0
    %110 = vmatpush.msra.mxu0 0.0
    %111 = vmatpush.msra.mxu0 0.0
    %112 = vmatpush.msra.mxu0 0.0
    %113 = vmatpush.msra.mxu0 0.0
    %114 = vmatpush.msra.mxu0 0.0
    %115 = vmatpush.msra.mxu0 0.0
    %116 = vmatpush.msra.mxu0 0.0
    %117 = vmatpush.msra.mxu0 0.0
    %118 = vmatpush.msra.mxu0 %v97
    %119 = vmatpush.msra.mxu0 %v96
    %120 = vmatpush.msra.mxu0 %v95
    %121 = vmatpush.msra.mxu0 %v94
    %122 = vmatmul.f32.gmra.mxu0 %v104
    %v123 = vpop.f32.mrf.mxu0
    %v124 = vadd.f32 %v100, %v123
    %125 = vdwg.mxu0
    %v126 = vmax.f32 %v124, 0.0
    %v127 = vld [vmem:[%s5] sm:$0xff]
    %v128 = vld [vmem:[%s5 + $0x8] sm:$0xff]
    %v129 = vld [vmem:[%s5 + $0x10] sm:$0xff]
    %v130 = vld [vmem:[%s5 + $0x18] sm:$0xff]
    %v131 = vld [vmem:[%s6] sm:$0x1]
    %v133 = vperm.slane %v131, 0
    %v136 = vsel %vm102, %v126, 0
    %138 = vmatpush.msra.mxu0 0.0
    %139 = vmatpush.msra.mxu0 0.0
    %140 = vmatpush.msra.mxu0 0.0
    %141 = vmatpush.msra.mxu0 0.0
    %142 = vmatpush.msra.mxu0 0.0
    %143 = vmatpush.msra.mxu0 0.0
    %144 = vmatpush.msra.mxu0 0.0
    %145 = vmatpush.msra.mxu0 0.0
    %146 = vmatpush.msra.mxu0 0.0
    %147 = vmatpush.msra.mxu0 0.0
    %148 = vmatpush.msra.mxu0 0.0
    %149 = vmatpush.msra.mxu0 0.0
    %150 = vmatpush.msra.mxu0 %v130
    %151 = vmatpush.msra.mxu0 %v129
    %152 = vmatpush.msra.mxu0 %v128
    %153 = vmatpush.msra.mxu0 %v127
    %154 = vmatmul.f32.gmra.mxu0 %v136
    %v155 = vpop.f32.mrf.mxu0
    %v156 = vadd.f32 %v133, %v155
    %157 = vdwg.mxu0
    %v158 = vxor.u32 %v156, 2147483648
    %v159 = vmul.f32 %v158, 1.442695
    %v160 = vpow.pop %v159
    %v161 = vadd.f32 %v160, 1.0
    %v162 = vrcp.pop %v161
    %v163 = vmul.f32 %v161, %v162
    %v164 = vsub.f32 1.0, %v163
    %v165 = vmul.f32 %v162, %v164
    %v166 = vadd.f32 %v162, %v165
    %vm167 = vweird.f32 %v161
    %vm168 = vweird.f32 %v162
    %vm169 = vmor %vm167, %vm168
    %v170 = vsel %vm169, %v162, %v166
    %v171 = vand.u32 2147483647, %v161
    %vm172 = vcmp.eq.f32.partialorder %v171, 8.507059e+37
    %v173 = vand.u32 %v161, 2147483648
    %v174 = vor.u32 1.1754944e-38, %v173
    %v175 = vsel %vm172, %v174, %v170
    %v176 = vmul.f32 1.0, %v175
    %v177 = vld [vmem:[%s7] sm:$0x1]
    %v179 = vperm.slane %v177, 0
    %v181 = vmul.f32 %v176, %v179
    %v182 = vld [vmem:[%s8] sm:$0x1]
    %v184 = vperm.slane %v182, 0
    %v186 = vadd.f32 %v181, %v184
    %vm187 = vcmask 31744
    %188 = vst.msk [vmem:[%s9] sm:$0xff] %vm187, %v186
    // Predicated region
    $region46: #{tpu_custom_call.1} parent=1 // pred_check
      _
    $region47: #{tpu_custom_call.1} parent=1 // pred_check_branch
      %190 = sbr.rel (0) target = $region49
    $region48: #{tpu_custom_call.1} parent=1 // pred_region
      _
    $region49: #{tpu_custom_call.1} parent=1 // pred_fallthru
      _
    // Predicated region
    $region50: #{tpu_custom_call.1} parent=1 // pred_check
      _
    $region51: #{tpu_custom_call.1} parent=1 // pred_check_branch
      %192 = sbr.rel (0) target = $region53
    $region52: #{tpu_custom_call.1} parent=1 // pred_region
      _
    $region53: #{tpu_custom_call.1} parent=1 // pred_fallthru
      _
    %193 = vsyncpa [#allocation3], 1
    %194 = vsyncpa [#allocation5], 1

</llo_original>
